<compile_context>
chip_gen: v7x
topology: tpu7x:2x2x1
jax: 0.10.0
libtpu: 0.0.40
codegen_flags: <defaults>
</compile_context>

<pallas_src>
import jax
import jax.numpy as jnp
from jax.experimental import pallas as pl
from jax.experimental.pallas import tpu as pltpu


_TARGET_BLOCK_BYTES = 2 * 1024 * 1024  # ~2 MiB per block per buffer


def _affine_kernel(w_ref, b_ref, x_ref, o_ref):
    # w_ref / b_ref are (1, 1) scalars in SMEM; x_ref / o_ref are one
    # lane-dense (tile_rows, lane) tile of the flattened activation in VMEM.
    w = w_ref[0, 0]
    b = b_ref[0, 0]
    o_ref[...] = x_ref[...] * w + b


def dynamic_model_forward(x, weight, bias):
    """Forward pass of DynamicModel.

    x      : [N, 1, H, W] (NCHW, like PyTorch) or None
    weight : [1, 1, 1, 1] Conv2d weight
    bias   : [1]          Conv2d bias
    returns: same shape/dtype as x (None passes through, as in the module)
    """
    if x is None:
        return None

    N, C, H, W = x.shape
    assert C == 1, "DynamicModel's conv expects a single input channel"

    total = N * C * H * W
    dtype = x.dtype
    itemsize = jnp.dtype(dtype).itemsize

    # 1) Widest lane-dense last dim that divides the element count exactly;
    #    otherwise fall back to 128 and zero-pad the tail.
    lane = next((c for c in (1024, 512, 256, 128) if total % c == 0), 128)
    rows = (total + lane - 1) // lane

    # 2) Row-tile size targeting ~2 MiB blocks (multiple of 8 sublanes).
    target_rows = max(8, _TARGET_BLOCK_BYTES // (lane * itemsize))
    if rows <= target_rows:
        # Single block equal to the full (rows, lane) array -- always a legal
        # block shape regardless of the (8, 128) divisibility rule.
        tile_rows = rows
        grid_steps = 1
    else:
        tile_rows = target_rows   # power-of-two, multiple of 8
        grid_steps = (rows + tile_rows - 1) // tile_rows

    padded_total = grid_steps * tile_rows * lane
    flat = x.reshape(total)
    if padded_total != total:
        flat = jnp.pad(flat, (0, padded_total - total))
    x2d = flat.reshape(grid_steps * tile_rows, lane)

    w_s = weight.reshape(1, 1).astype(dtype)
    b_s = bias.reshape(1, 1).astype(dtype)

    out2d = pl.pallas_call(
        _affine_kernel,
        out_shape=jax.ShapeDtypeStruct(x2d.shape, dtype),
        grid=(grid_steps,),
        in_specs=[
            pl.BlockSpec(memory_space=pltpu.MemorySpace.SMEM),  # weight scalar
            pl.BlockSpec(memory_space=pltpu.MemorySpace.SMEM),  # bias scalar
            pl.BlockSpec((tile_rows, lane), lambda i: (i, 0)),  # activation tile
        ],
        out_specs=pl.BlockSpec((tile_rows, lane), lambda i: (i, 0)),
        compiler_params=pltpu.CompilerParams(
            dimension_semantics=("parallel",)),
    )(w_s, b_s, x2d)

    out_flat = out2d.reshape(padded_total)
    if padded_total != total:
        out_flat = out_flat[:total]
    return out_flat.reshape(N, C, H, W)


if __name__ == "__main__":
    key = jax.random.PRNGKey(0)
    k_x, k_w, k_b = jax.random.split(key, 3)

    # Deterministic parameters consistent with Conv2d(1, 1, 1).
    weight = jax.random.normal(k_w, (1, 1, 1, 1), dtype=jnp.float32)
    bias = jax.random.normal(k_b, (1,), dtype=jnp.float32)

    # Case 1: element count divisible by 128 -> fully lane-dense, no padding.
    x = jax.random.normal(k_x, (2, 1, 16, 16), dtype=jnp.float32)
    out = jax.block_until_ready(dynamic_model_forward(x, weight, bias))
    ref = x * weight[0, 0, 0, 0] + bias[0]
    assert out.shape == x.shape and out.dtype == x.dtype
    assert jnp.allclose(out, ref, atol=1e-6), "mismatch vs reference (case 1)"

    # Case 2: element count NOT divisible by 128 -> exercises the pad path.
    x2 = jax.random.normal(k_x, (2, 1, 15, 15), dtype=jnp.float32)
    out2 = jax.block_until_ready(dynamic_model_forward(x2, weight, bias))
    ref2 = x2 * weight[0, 0, 0, 0] + bias[0]
    assert out2.shape == x2.shape
    assert jnp.allclose(out2, ref2, atol=1e-6), "mismatch vs reference (case 2)"

    # Case 3: larger input -> exercises the multi-step pipelined grid.
    x3 = jax.random.normal(k_x, (4, 1, 512, 512), dtype=jnp.float32)
    out3 = jax.block_until_ready(dynamic_model_forward(x3, weight, bias))
    ref3 = x3 * weight[0, 0, 0, 0] + bias[0]
    assert jnp.allclose(out3, ref3, atol=1e-6), "mismatch vs reference (case 3)"

    # None passes through, matching the PyTorch forward.
    assert dynamic_model_forward(None, weight, bias) is None

    print("KERNEL_OK")
</pallas_src>

<mosaic_0001>
module attributes {stable_mosaic.version = 11 : i64} {
  func.func @_affine_kernel(%arg0: i32, %arg1: memref<1x1xf32, #tpu.memory_space<smem>>, %arg2: memref<1x1xf32, #tpu.memory_space<smem>>, %arg3: memref<1x512xf32, #tpu.memory_space<vmem>>, %arg4: memref<1x512xf32, #tpu.memory_space<vmem>>) attributes {dimension_semantics = [#tpu.dimension_semantics<parallel>], iteration_bounds = array<i64: 1>, scalar_prefetch = 0 : i64, scratch_operands = 0 : i64, tpu.core_type = #tpu.core_type<tc>, window_params = [{transform_indices = @transform_0, window_bounds = array<i64: 1, 1>}, {transform_indices = @transform_1, window_bounds = array<i64: 1, 1>}, {transform_indices = @transform_2, window_bounds = array<i64: 1, 512>}, {transform_indices = @transform_3, window_bounds = array<i64: 1, 512>}]} {
    %c0 = arith.constant 0 : index
    %c0_0 = arith.constant 0 : index
    %0 = memref.load %arg1[%c0, %c0_0] : memref<1x1xf32, #tpu.memory_space<smem>>
    %c0_1 = arith.constant 0 : index
    %c0_2 = arith.constant 0 : index
    %1 = memref.load %arg2[%c0_1, %c0_2] : memref<1x1xf32, #tpu.memory_space<smem>>
    %c0_3 = arith.constant 0 : index
    %c0_4 = arith.constant 0 : index
    %2 = vector.load %arg3[%c0_3, %c0_4] : memref<1x512xf32, #tpu.memory_space<vmem>>, vector<1x512xf32>
    %3 = vector.broadcast %0 : f32 to vector<1x512xf32>
    %4 = arith.mulf %2, %3 : vector<1x512xf32>
    %5 = vector.broadcast %1 : f32 to vector<1x512xf32>
    %6 = arith.addf %4, %5 : vector<1x512xf32>
    %c0_5 = arith.constant 0 : index
    %c0_6 = arith.constant 0 : index
    %7 = vector.load %arg4[%c0_5, %c0_6] : memref<1x512xf32, #tpu.memory_space<vmem>>, vector<1x512xf32>
    tpu.vector_store %arg4[%c0_5, %c0_6], %6 {strides = array<i32>} : memref<1x512xf32, #tpu.memory_space<vmem>>, vector<1x512xf32>,
    return
  }
  func.func @transform_0(%arg0: i32) -> (i32, i32) {
    %c0_i32 = arith.constant 0 : i32
    %c0_i32_0 = arith.constant 0 : i32
    %c0_i32_1 = arith.constant 0 : i32
    return %c0_i32, %c0_i32_0 : i32, i32
  }
  func.func @transform_1(%arg0: i32) -> (i32, i32) {
    %c0_i32 = arith.constant 0 : i32
    %c0_i32_0 = arith.constant 0 : i32
    %c0_i32_1 = arith.constant 0 : i32
    return %c0_i32, %c0_i32_0 : i32, i32
  }
  func.func @transform_2(%arg0: i32) -> (i32, i32) {
    %c0_i32 = arith.constant 0 : i32
    %c0_i32_0 = arith.constant 0 : i32
    return %arg0, %c0_i32 : i32, i32
  }
  func.func @transform_3(%arg0: i32) -> (i32, i32) {
    %c0_i32 = arith.constant 0 : i32
    %c0_i32_0 = arith.constant 0 : i32
    return %arg0, %c0_i32 : i32, i32
  }
}

</mosaic_0001>

<llo_original>
// kernel: tpu_custom_call.1
$region0: #{tpu_custom_call.1}
  #allocation0 [shape = 'u32[]', space=smem, size = 0x4, offset = 0x4, fixed_abs, tag = 'smem constant byte address 0x4 - core index']
  #allocation1 [shape = 'u32[144,128]{1,0:T(1,128)}', space=vmem, size = 0x12000, scoped, tag = 'internal scratch']
  #allocation2 [shape = 'f32[1,1]{1,0:T(1,128)S(6)}', space=smem, size = 0x200, scoped, tag = 'scoped memory for tpu_custom_call.1']
  #allocation3 [shape = 'f32[1,1]{1,0:T(1,128)S(6)}', space=smem, size = 0x200, scoped, tag = 'scoped memory for tpu_custom_call.1']
  %s0 = inlined_call_operand.<no memory space> [shape: f32[1,1], index: 0, kind: input, shape index: {}]
  %s1 = inlined_call_operand.<no memory space> [shape: f32[1,1], index: 1, kind: input, shape index: {}]
  %s2 = inlined_call_operand.vmem [shape: f32[1,512], index: 2, kind: input, shape index: {}]
  %s3 = inlined_call_operand.hbm [shape: f32[1,512], index: 3, kind: output, shape index: {}]
  %s4 = sld [smem:[#allocation0]]
  $region22: #{tpu_custom_call.1} parent=0
    _
  %s6 = ssub.s32 1, %s4
  %s7 = scalar_select 0, %s6, %s4
  %8 = sst [smem:[#allocation2]] %s0
  %9 = sst [smem:[#allocation3]] %s1
  $region1: #{tpu_custom_call.1} parent=0
    #allocation4 [shape = 'u8[2048]{0}', space=vmem, size = 0x800, scoped, tag = 'output window, operand 0, single buffered']
    #allocation5 [shape = 's32[1]{0}', space=sflag, size = 0x4, scoped, tag = 'scoped memory for tpu_custom_call.1']
    %10 = vsyncpa [#allocation5], 0
    // Predicated region
    $region2: #{tpu_custom_call.1} parent=1 // pred_check
      _
    $region3: #{tpu_custom_call.1} parent=1 // pred_check_branch
      %12 = sbr.rel (0) target = $region5
    $region4: #{tpu_custom_call.1} parent=1 // pred_region
      _
    $region5: #{tpu_custom_call.1} parent=1 // pred_fallthru
      _
    // Predicated region
    $region6: #{tpu_custom_call.1} parent=1 // pred_check
      _
    $region7: #{tpu_custom_call.1} parent=1 // pred_check_branch
      %14 = sbr.rel (0) target = $region9
    $region8: #{tpu_custom_call.1} parent=1 // pred_region
      _
    $region9: #{tpu_custom_call.1} parent=1 // pred_fallthru
      _
    // Predicated region
    $region10: #{tpu_custom_call.1} parent=1 // pred_check
      _
    $region11: #{tpu_custom_call.1} parent=1 // pred_check_branch
      %16 = sbr.rel (0) target = $region13
    $region12: #{tpu_custom_call.1} parent=1 // pred_region
      _
    $region13: #{tpu_custom_call.1} parent=1 // pred_fallthru
      _
    %s17 = sld [smem:[#allocation2]]
    %s18 = sld [smem:[#allocation3]]
    %v19 = vld [vmem:[%s2] sm:$0xf]
    %v20 = vstv %s17
    %v21 = vmul.f32 %v19, %v20
    %v22 = vstv %s18
    %v23 = vadd.f32 %v21, %v22
    %v24 = vlaneseq
    %vm25 = vcmp.ge.s32.totalorder %v24, 0
    %vm26 = vcmp.lt.s32.totalorder %v24, 512
    %vm27 = vmand %vm25, %vm26
    %28 = vst.msk [vmem:[#allocation4] sm:$0xf] %vm27, %v23
    // Predicated region
    $region14: #{tpu_custom_call.1} parent=1 // pred_check
      _
    $region15: #{tpu_custom_call.1} parent=1 // pred_check_branch
      %30 = sbr.rel (0) target = $region17
    $region16: #{tpu_custom_call.1} parent=1 // pred_region
      %s32 = ssub.s32 64, 64
      %33 = vsyncadd [#allocation5], %s32
      %s35 = sshll.u32 [#allocation4], 4
      %s36 = int_to_ptr.vmem [resolvable:$true] %s35
      %38 = dma.vmem_to_hbm [thread:$0]  %s36, 64, %s3, [#allocation5]
    $region17: #{tpu_custom_call.1} parent=1 // pred_fallthru
      _
    // Predicated region
    $region18: #{tpu_custom_call.1} parent=1 // pred_check
      _
    $region19: #{tpu_custom_call.1} parent=1 // pred_check_branch
      %40 = sbr.rel (0) target = $region21
    $region20: #{tpu_custom_call.1} parent=1 // pred_region
      %41 = dma.done [#allocation5], 64
    $region21: #{tpu_custom_call.1} parent=1 // pred_fallthru
      _
    %42 = vsyncpa [#allocation5], 1

</llo_original>
